<compile_context>
chip_gen: v7x
topology: tpu7x:2x2x1
jax: 0.10.0
libtpu: 0.0.40
codegen_flags: <defaults>
</compile_context>

<pallas_src>
import functools

import jax
import jax.numpy as jnp
from jax import lax
from jax.experimental import pallas as pl
from jax.experimental.pallas import tpu as pltpu


def _scale_by_inv_pow(x, div, beta):
    """x * div**(-beta); div >= 1 for alpha >= 0. Cheap EUP forms for common betas."""
    if beta == 0.0:
        return x
    if beta == 1.0:
        return x / div
    if beta == 0.5:
        return x * lax.rsqrt(div)
    if beta == 0.75:
        r = lax.rsqrt(div)                 # div**-0.5
        return x * (r * jnp.sqrt(r))       # div**-0.75 (rsqrt+sqrt, no log/exp chain)
    # Generic beta. NOTE: assumes alpha >= 0 so div >= 1 and log is safe
    # (PyTorch's pow would NaN for fractional beta on a negative base anyway).
    return x * jnp.exp(-beta * jnp.log(div))


def _lrn_kernel_pointwise(x_ref, o_ref, *, alpha, beta):
    # local_size == 1: pure pointwise LRN, no windowed sum needed.
    x = x_ref[...].astype(jnp.float32)
    div = x * x * alpha + 1.0
    o_ref[...] = _scale_by_inv_pow(x, div, beta).astype(o_ref.dtype)


def _lrn_kernel_windowed(x_ref, o_ref, sq_ref, *, local_size, shift, alpha, beta):
    # x_ref / o_ref : (B, R, TL) block; R = D * shift is the full row extent.
    # sq_ref        : (B, R + 2*pad*shift, TL) f32 scratch.  Its halo is never
    #                 initialized; halo reads are masked out via a select below,
    #                 which is cheaper than re-zeroing every grid step and safe
    #                 on megacore (each core owns its own scratch).
    pad = (local_size - 1) // 2
    x = x_ref[...].astype(jnp.float32)
    _, R, _ = x.shape

    sq = x * x
    sq_ref[:, pad * shift: pad * shift + R, :] = sq

    # Row index -> tap validity.  Tap offset j (from the window center) is valid
    # at output row r iff 0 <= (r // shift) + j < D, i.e.
    #   j < 0:  r >= -j*shift        j > 0:  r < R - j*shift
    # which is exactly "the slice row is real data, not halo".  A select (not a
    # multiply) is used so uninitialized-halo NaNs can never leak into acc.
    row = lax.broadcasted_iota(jnp.int32, x.shape, 1)

    acc = sq  # center tap straight from registers (no reload)
    for k in range(local_size):
        j = k - pad
        if j == 0:
            continue
        tap = sq_ref[:, k * shift: k * shift + R, :]
        cond = (row >= -j * shift) if j < 0 else (row < R - j * shift)
        acc = acc + jnp.where(cond, tap, 0.0)

    # AvgPool3d(count_include_pad=True): divisor is always local_size.
    div = acc * (alpha / float(local_size)) + 1.0
    o_ref[...] = _scale_by_inv_pow(x, div, beta).astype(o_ref.dtype)


def _ceil_div(a, b):
    return -(-a // b)


def _balanced(total, max_block, quantum):
    """Block size <= max_block (a multiple of quantum) balancing cdiv(total, blk)."""
    n_blocks = _ceil_div(total, max_block)
    return _ceil_div(_ceil_div(total, n_blocks), quantum) * quantum


def lrn(x, local_size=1, alpha=1.0, beta=0.75, *, block_bytes=2 << 20):
    """Pallas LRN over a 5D NCDHW tensor (ACROSS_CHANNELS=True semantics).

    block_bytes: target f32 block size.  ~2 MiB sits on the measured HBM-roofline
    plateau while in+out double buffers plus the f32 scratch stay well inside the
    32 MiB scoped VMEM on v5e/v6e/v7x (v6e could go 4-8 MiB, kept uniform here).
    """
    assert x.ndim == 5, "expected NCDHW input"
    assert local_size % 2 == 1, "only odd local_size supported (shape-preserving)"
    N, C, D, H, W = x.shape
    NC = N * C
    pad = (local_size - 1) // 2

    # Layout: prefer (NC, D*H, W) when W is a lane multiple (dense sublane
    # packing even when D < 8, fully unmasked stores); otherwise fuse H*W into
    # the lane axis.  Both reshapes are contiguous (no HBM copy).
    if W % 128 == 0 and D * H * 128 * 4 <= block_bytes:
        rows, lane, shift = D * H, W, H
    else:
        rows, lane, shift = D, H * W, 1
    xr = x.reshape(NC, rows, lane)

    # Tile selection (f32-equivalent bytes).  Ragged edge blocks are handled by
    # cdiv grids (out-of-bounds reads are discarded garbage rows/lanes, writes
    # are dropped), so neither NC nor the lane extent needs to be divisible.
    slab_bytes = rows * lane * 4
    if slab_bytes <= block_bytes:
        tl = lane                                   # full lane extent (may be masked tail)
        b = _balanced(NC, max(1, min(NC, block_bytes // slab_bytes)), 1)
    else:
        b = 1                                       # split the lane axis instead (halo-free)
        tl_max = max(128, (block_bytes // (rows * 4)) // 128 * 128)
        tl = min(_balanced(lane, tl_max, 128), lane)

    grid = (pl.cdiv(NC, b), pl.cdiv(lane, tl))
    block = (b, rows, tl)       # rows = full window axis; tl = 128-multiple or full dim
    index_map = lambda i, j: (i, 0, j)

    if local_size == 1:
        kernel = functools.partial(_lrn_kernel_pointwise,
                                   alpha=float(alpha), beta=float(beta))
        scratch_shapes = []
    else:
        kernel = functools.partial(_lrn_kernel_windowed,
                                   local_size=local_size, shift=shift,
                                   alpha=float(alpha), beta=float(beta))
        scratch_shapes = [pltpu.VMEM((b, rows + 2 * pad * shift, tl), jnp.float32)]

    out = pl.pallas_call(
        kernel,
        out_shape=jax.ShapeDtypeStruct((NC, rows, lane), x.dtype),
        grid_spec=pltpu.PrefetchScalarGridSpec(
            num_scalar_prefetch=0,
            grid=grid,
            in_specs=[pl.BlockSpec(block, index_map)],
            out_specs=pl.BlockSpec(block, index_map),
            scratch_shapes=scratch_shapes),
        compiler_params=pltpu.CompilerParams(
            dimension_semantics=("parallel", "parallel"),
            vmem_limit_bytes=32 * 1024 * 1024),
    )(xr)

    return out.reshape(N, C, D, H, W)


def lrn_ref(x, local_size=1, alpha=1.0, beta=0.75):
    """Pure-JAX reference matching the PyTorch module."""
    pad = (local_size - 1) // 2
    D = x.shape[2]
    sq = x.astype(jnp.float32) ** 2
    sqp = jnp.pad(sq, ((0, 0), (0, 0), (pad, pad), (0, 0), (0, 0)))
    acc = sum(sqp[:, :, k:k + D] for k in range(local_size))
    div = (acc * (alpha / float(local_size)) + 1.0) ** beta
    return (x.astype(jnp.float32) / div).astype(x.dtype)


if __name__ == "__main__":
    # AlexNet-3D style feature map, W not lane-aligned -> fused-H*W layout with
    # a masked 169-lane tail store.  NCDHW.
    x = jax.random.normal(jax.random.PRNGKey(0), (2, 3, 4, 13, 13), jnp.float32)
    for ls, alpha, beta in [(1, 1.0, 0.75), (3, 1e-3, 0.75), (5, 2e-2, 0.5)]:
        out = jax.block_until_ready(lrn(x, local_size=ls, alpha=alpha, beta=beta))
        ref = lrn_ref(x, local_size=ls, alpha=alpha, beta=beta)
        assert out.shape == x.shape
        assert jnp.allclose(out, ref, atol=2e-5, rtol=2e-5), f"mismatch ls={ls}"

    # Tiny block budgets exercise the ragged-grid paths at small shapes:
    #  (a) lane-split grid axis with a ragged 41-lane tail block,
    #  (b) ragged row blocks (7 slabs -> blocks of 3, 3, 1).
    x3 = jax.random.normal(jax.random.PRNGKey(2), (7, 1, 4, 13, 13), jnp.float32)
    out3a = jax.block_until_ready(
        lrn(x3, local_size=3, alpha=1e-2, beta=0.75, block_bytes=2048))
    out3b = jax.block_until_ready(
        lrn(x3, local_size=5, alpha=1e-2, beta=0.75, block_bytes=8192))
    assert jnp.allclose(out3a, lrn_ref(x3, 3, 1e-2, 0.75), atol=2e-5, rtol=2e-5)
    assert jnp.allclose(out3b, lrn_ref(x3, 5, 1e-2, 0.75), atol=2e-5, rtol=2e-5)

    # Lane-aligned W -> (NC, D*H, W) packed-sublane layout; bf16 I/O (math stays
    # f32 inside the kernel).
    x2 = jax.random.normal(jax.random.PRNGKey(1), (2, 2, 6, 8, 128), jnp.bfloat16)
    out2 = jax.block_until_ready(lrn(x2, local_size=3, alpha=1e-2, beta=0.75))
    ref2 = lrn_ref(x2, local_size=3, alpha=1e-2, beta=0.75)
    assert jnp.allclose(out2.astype(jnp.float32), ref2.astype(jnp.float32),
                        atol=2e-2, rtol=2e-2)

    print("KERNEL_OK")
</pallas_src>

<mosaic_0001>
module attributes {stable_mosaic.version = 11 : i64} {
  func.func @_lrn_kernel_pointwise(%arg0: i32, %arg1: i32, %arg2: memref<6x4x169xf32, #tpu.memory_space<vmem>>, %arg3: memref<6x4x169xf32, #tpu.memory_space<vmem>>) attributes {dimension_semantics = [#tpu.dimension_semantics<parallel>, #tpu.dimension_semantics<parallel>], iteration_bounds = array<i64: 1, 1>, scalar_prefetch = 0 : i64, scratch_operands = 0 : i64, tpu.core_type = #tpu.core_type<tc>, window_params = [{transform_indices = @transform_0, window_bounds = array<i64: 6, 4, 169>}, {transform_indices = @transform_1, window_bounds = array<i64: 6, 4, 169>}]} {
    %c0 = arith.constant 0 : index
    %c0_0 = arith.constant 0 : index
    %c0_1 = arith.constant 0 : index
    %0 = vector.load %arg2[%c0, %c0_0, %c0_1] : memref<6x4x169xf32, #tpu.memory_space<vmem>>, vector<6x4x169xf32>
    %1 = arith.mulf %0, %0 : vector<6x4x169xf32>
    %cst = arith.constant 1.000000e+00 : f32
    %2 = vector.broadcast %cst : f32 to vector<6x4x169xf32>
    %3 = arith.mulf %1, %2 : vector<6x4x169xf32>
    %cst_2 = arith.constant 1.000000e+00 : f32
    %4 = vector.broadcast %cst_2 : f32 to vector<6x4x169xf32>
    %5 = arith.addf %3, %4 : vector<6x4x169xf32>
    %6 = math.rsqrt %5 : vector<6x4x169xf32>
    %7 = math.sqrt %6 : vector<6x4x169xf32>
    %8 = arith.mulf %6, %7 : vector<6x4x169xf32>
    %9 = arith.mulf %0, %8 : vector<6x4x169xf32>
    %c0_3 = arith.constant 0 : index
    %c0_4 = arith.constant 0 : index
    %c0_5 = arith.constant 0 : index
    %10 = vector.load %arg3[%c0_3, %c0_4, %c0_5] : memref<6x4x169xf32, #tpu.memory_space<vmem>>, vector<6x4x169xf32>
    tpu.vector_store %arg3[%c0_3, %c0_4, %c0_5], %9 {strides = array<i32>} : memref<6x4x169xf32, #tpu.memory_space<vmem>>, vector<6x4x169xf32>,
    return
  }
  func.func @transform_0(%arg0: i32, %arg1: i32) -> (i32, i32, i32) {
    %c0_i32 = arith.constant 0 : i32
    %c0_i32_0 = arith.constant 0 : i32
    return %arg0, %c0_i32, %arg1 : i32, i32, i32
  }
  func.func @transform_1(%arg0: i32, %arg1: i32) -> (i32, i32, i32) {
    %c0_i32 = arith.constant 0 : i32
    %c0_i32_0 = arith.constant 0 : i32
    return %arg0, %c0_i32, %arg1 : i32, i32, i32
  }
}

</mosaic_0001>

<llo_original>
// kernel: tpu_custom_call.1
$region0: #{tpu_custom_call.1}
  #allocation0 [shape = 'u32[]', space=smem, size = 0x4, offset = 0x4, fixed_abs, tag = 'smem constant byte address 0x4 - core index']
  #allocation1 [shape = 'u32[144,128]{1,0:T(1,128)}', space=vmem, size = 0x12000, scoped, tag = 'internal scratch']
  %s0 = inlined_call_operand.hbm [shape: f32[6,4,169], index: 0, kind: input, shape index: {}]
  %s1 = inlined_call_operand.hbm [shape: f32[6,4,169], index: 1, kind: output, shape index: {}]
  %s2 = sld [smem:[#allocation0]]
  $region18: #{tpu_custom_call.1} parent=0
    _
  %s4 = ssub.s32 1, %s2
  %s5 = scalar_select 0, %s4, %s2
  $region1: #{tpu_custom_call.1} parent=0
    #allocation2 [shape = 'u8[24576]{0}', space=vmem, size = 0x6000, scoped, tag = 'input window, operand 0, single buffered']
    #allocation3 [shape = 's32[1]{0}', space=sflag, size = 0x4, scoped, tag = 'scoped memory for tpu_custom_call.1']
    #allocation4 [shape = 's32[1]{0}', space=sflag, size = 0x4, scoped, tag = 'scoped memory for tpu_custom_call.1']
    #allocation5 [shape = 'u8[24576]{0}', space=vmem, size = 0x6000, scoped, tag = 'output window, operand 0, single buffered']
    %6 = vsyncpa [#allocation3], 0
    %7 = vsyncpa [#allocation4], 0
    // Predicated region
    $region2: #{tpu_custom_call.1} parent=1 // pred_check
      _
    $region3: #{tpu_custom_call.1} parent=1 // pred_check_branch
      %9 = sbr.rel (0) target = $region5
    $region4: #{tpu_custom_call.1} parent=1 // pred_region
      %s11 = ssub.s32 768, 768
      %12 = vsyncadd [#allocation3], %s11
      %s13 = sshll.u32 [#allocation2], 4
      %s14 = int_to_ptr.vmem [resolvable:$true] %s13
      %19 = dma.hbm_to_vmem [thread:$0]  %s0, 768, %s14, [#allocation3], 128, 128, 8
    $region5: #{tpu_custom_call.1} parent=1 // pred_fallthru
      _
    // Predicated region
    $region6: #{tpu_custom_call.1} parent=1 // pred_check
      _
    $region7: #{tpu_custom_call.1} parent=1 // pred_check_branch
      %21 = sbr.rel (0) target = $region9
    $region8: #{tpu_custom_call.1} parent=1 // pred_region
      %22 = dma.done [#allocation3], 768
    $region9: #{tpu_custom_call.1} parent=1 // pred_fallthru
      _
    %v23 = vld [vmem:[#allocation2] sm:$0xff]
    %v24 = vld [vmem:[#allocation2 + $0x8] sm:$0xff]
    %v25 = vld [vmem:[#allocation2 + $0x10] sm:$0xff]
    %v26 = vld [vmem:[#allocation2 + $0x18] sm:$0xff]
    %v27 = vld [vmem:[#allocation2 + $0x20] sm:$0xff]
    %v28 = vld [vmem:[#allocation2 + $0x28] sm:$0xff]
    %v29 = vmul.f32 %v23, %v23
    %v30 = vmul.f32 %v24, %v24
    %v31 = vmul.f32 %v25, %v25
    %v32 = vmul.f32 %v26, %v26
    %v33 = vmul.f32 %v27, %v27
    %v34 = vmul.f32 %v28, %v28
    %v35 = vadd.f32 %v29, 1.0
    %v36 = vadd.f32 %v30, 1.0
    %v37 = vadd.f32 %v31, 1.0
    %v38 = vadd.f32 %v32, 1.0
    %v39 = vadd.f32 %v33, 1.0
    %v40 = vadd.f32 %v34, 1.0
    %v41 = vrsqrt.pop %v35
    %v42 = vrsqrt.pop %v36
    %v43 = vrsqrt.pop %v37
    %v44 = vrsqrt.pop %v38
    %v45 = vrsqrt.pop %v39
    %v46 = vrsqrt.pop %v40
    %v47 = vrsqrt.pop %v41
    %v48 = vmul.f32 %v41, %v47
    %vm49 = vcmp.eq.f32.partialorder %v41, inf
    %v50 = vsel %vm49, %v41, %v48
    %vm51 = vcmp.eq.f32.partialorder %v41, 0.0
    %v52 = vand.u32 %v41, 2147483648
    %v53 = vsel %vm51, %v52, %v50
    %v54 = vrsqrt.pop %v42
    %v55 = vmul.f32 %v42, %v54
    %vm56 = vcmp.eq.f32.partialorder %v42, inf
    %v57 = vsel %vm56, %v42, %v55
    %vm58 = vcmp.eq.f32.partialorder %v42, 0.0
    %v59 = vand.u32 %v42, 2147483648
    %v60 = vsel %vm58, %v59, %v57
    %v61 = vrsqrt.pop %v43
    %v62 = vmul.f32 %v43, %v61
    %vm63 = vcmp.eq.f32.partialorder %v43, inf
    %v64 = vsel %vm63, %v43, %v62
    %vm65 = vcmp.eq.f32.partialorder %v43, 0.0
    %v66 = vand.u32 %v43, 2147483648
    %v67 = vsel %vm65, %v66, %v64
    %v68 = vrsqrt.pop %v44
    %v69 = vmul.f32 %v44, %v68
    %vm70 = vcmp.eq.f32.partialorder %v44, inf
    %v71 = vsel %vm70, %v44, %v69
    %vm72 = vcmp.eq.f32.partialorder %v44, 0.0
    %v73 = vand.u32 %v44, 2147483648
    %v74 = vsel %vm72, %v73, %v71
    %v75 = vrsqrt.pop %v45
    %v76 = vmul.f32 %v45, %v75
    %vm77 = vcmp.eq.f32.partialorder %v45, inf
    %v78 = vsel %vm77, %v45, %v76
    %vm79 = vcmp.eq.f32.partialorder %v45, 0.0
    %v80 = vand.u32 %v45, 2147483648
    %v81 = vsel %vm79, %v80, %v78
    %v82 = vrsqrt.pop %v46
    %v83 = vmul.f32 %v46, %v82
    %vm84 = vcmp.eq.f32.partialorder %v46, inf
    %v85 = vsel %vm84, %v46, %v83
    %vm86 = vcmp.eq.f32.partialorder %v46, 0.0
    %v87 = vand.u32 %v46, 2147483648
    %v88 = vsel %vm86, %v87, %v85
    %v89 = vmul.f32 %v41, %v53
    %v90 = vmul.f32 %v42, %v60
    %v91 = vmul.f32 %v43, %v67
    %v92 = vmul.f32 %v44, %v74
    %v93 = vmul.f32 %v45, %v81
    %v94 = vmul.f32 %v46, %v88
    %v95 = vmul.f32 %v23, %v89
    %v96 = vmul.f32 %v24, %v90
    %v97 = vmul.f32 %v25, %v91
    %v98 = vmul.f32 %v26, %v92
    %v99 = vmul.f32 %v27, %v93
    %v100 = vmul.f32 %v28, %v94
    %vm101 = vcmask 1043456
    %vm102 = vcmask 334852
    %vm103 = vmor %vm102, %vm101
    %104 = vst.msk [vmem:[#allocation5] sm:$0xff] %vm103, %v95
    %105 = vst.msk [vmem:[#allocation5 + $0x8] sm:$0xff] %vm103, %v96
    %106 = vst.msk [vmem:[#allocation5 + $0x10] sm:$0xff] %vm103, %v97
    %107 = vst.msk [vmem:[#allocation5 + $0x18] sm:$0xff] %vm103, %v98
    %108 = vst.msk [vmem:[#allocation5 + $0x20] sm:$0xff] %vm103, %v99
    %109 = vst.msk [vmem:[#allocation5 + $0x28] sm:$0xff] %vm103, %v100
    // Predicated region
    $region10: #{tpu_custom_call.1} parent=1 // pred_check
      _
    $region11: #{tpu_custom_call.1} parent=1 // pred_check_branch
      %111 = sbr.rel (0) target = $region13
    $region12: #{tpu_custom_call.1} parent=1 // pred_region
      %s113 = ssub.s32 768, 768
      %114 = vsyncadd [#allocation4], %s113
      %s115 = sshll.u32 [#allocation5], 4
      %s116 = int_to_ptr.vmem [resolvable:$true] %s115
      %121 = dma.vmem_to_hbm [thread:$0]  %s116, 768, %s1, [#allocation4], 128, 128, 8
    $region13: #{tpu_custom_call.1} parent=1 // pred_fallthru
      _
    // Predicated region
    $region14: #{tpu_custom_call.1} parent=1 // pred_check
      _
    $region15: #{tpu_custom_call.1} parent=1 // pred_check_branch
      %123 = sbr.rel (0) target = $region17
    $region16: #{tpu_custom_call.1} parent=1 // pred_region
      %124 = dma.done [#allocation4], 768
    $region17: #{tpu_custom_call.1} parent=1 // pred_fallthru
      _
    %125 = vsyncpa [#allocation3], 1
    %126 = vsyncpa [#allocation4], 1

</llo_original>
